<compile_context>
chip_gen: v5e
topology: v5e:2x2
jax: 0.10.0
libtpu: 0.0.40
codegen_flags: <defaults>
</compile_context>

<pallas_src>
import jax
import jax.numpy as jnp
from jax.experimental import pallas as pl
from jax.experimental.pallas import tpu as pltpu


# Per-block VMEM budget (input block only). With double-buffered input and
# output blocks this pipelines at ~4x this figure, comfortably inside the
# 32 MiB scoped-VMEM limit on all of v5e / v6e / v7x.
_BLOCK_VMEM_BUDGET_BYTES = 4 * 1024 * 1024


def _pick_block_batch(B, C, HW, itemsize):
    """Largest divisor of B that fits the VMEM budget and keeps >=2 grid steps."""
    per_image = C * HW * itemsize
    bt_max = max(1, _BLOCK_VMEM_BUDGET_BYTES // per_image)
    if B >= 2:
        # Keep at least 2 grid steps so the parallel batch axis can shard
        # across both TensorCores on v7x (neutral on v5e/v6e).
        bt_max = min(bt_max, max(1, B // 2))
    bt = 1
    for d in range(1, int(bt_max) + 1):
        if B % d == 0:
            bt = d
    return bt


def _se_kernel(x_ref, w1_ref, w2_ref, o_ref):
    # x_ref, o_ref: (Bt, C, HW)   w1_ref: (C, Cr)   w2_ref: (Cr, C)
    x = x_ref[...]                                               # input dtype

    # Squeeze: global average pool over the spatial (lane) axis.
    # f32 accumulation without materializing a full f32 copy of the tile.
    y = jnp.mean(x, axis=-1, dtype=jnp.float32)                  # (Bt, C)

    # Excitation: FC -> ReLU -> FC -> Sigmoid.  Cr << 128 so the MXU is mostly
    # padding here, but with Bt-batched grid steps this is a negligible, fully
    # amortized cost (the kernel is HBM-bound).
    h = jnp.dot(y, w1_ref[...], preferred_element_type=jnp.float32)   # (Bt, Cr)
    h = jnp.maximum(h, 0.0)
    s = jnp.dot(h, w2_ref[...], preferred_element_type=jnp.float32)   # (Bt, C)
    s = jax.nn.sigmoid(s)

    # Scale: broadcast per-(b, c) gain over the spatial lanes; multiply in the
    # input dtype (no full-tile upcast/downcast round trip).
    o_ref[...] = x * s.astype(o_ref.dtype)[:, :, None]


def se_layer(x, w1, w2, *, block_batch=None):
    """x: (B, C, H, W) NCHW.  w1: (C, C//r).  w2: (C//r, C)."""
    B, C, H, W = x.shape
    HW = H * W
    x3 = x.reshape(B, C, HW)

    bt = block_batch if block_batch is not None else _pick_block_batch(
        B, C, HW, x.dtype.itemsize)
    assert B % bt == 0, f"block_batch={bt} must divide B={B}"

    out3 = pl.pallas_call(
        _se_kernel,
        out_shape=jax.ShapeDtypeStruct((B, C, HW), x.dtype),
        grid_spec=pltpu.PrefetchScalarGridSpec(
            num_scalar_prefetch=0,
            grid=(B // bt,),
            in_specs=[
                pl.BlockSpec((bt, C, HW), lambda b: (b, 0, 0)),
                pl.BlockSpec(w1.shape, lambda b: (0, 0)),   # resident, not re-fetched
                pl.BlockSpec(w2.shape, lambda b: (0, 0)),
            ],
            out_specs=pl.BlockSpec((bt, C, HW), lambda b: (b, 0, 0)),
        ),
        # Output HBM buffer aliases x3 (same shape/dtype, block i written only
        # after block i is read) -> halves HBM footprint for this op.
        input_output_aliases={0: 0},
        compiler_params=pltpu.CompilerParams(
            dimension_semantics=("parallel",),
            vmem_limit_bytes=32 * 1024 * 1024,
        ),
    )(x3, w1, w2)

    return out3.reshape(B, C, H, W)


def se_layer_ref(x, w1, w2):
    """Pure-JAX reference matching the PyTorch forward."""
    xf = x.astype(jnp.float32)
    y = jnp.mean(xf, axis=(2, 3))                       # (B, C)
    h = jnp.maximum(y @ w1, 0.0)                        # (B, Cr)
    s = jax.nn.sigmoid(h @ w2)                          # (B, C)
    return (xf * s[:, :, None, None]).astype(x.dtype)


if __name__ == "__main__":
    # HW = 256 is a multiple of 128 -> lane-dense stores; Bt auto-picks 2,
    # giving a 2-step parallel grid (both TCs busy on v7x).
    B, C, H, W = 4, 64, 16, 16
    reduction = 16
    Cr = C // reduction

    key = jax.random.PRNGKey(0)
    kx, k1, k2 = jax.random.split(key, 3)

    x = jax.random.normal(kx, (B, C, H, W), dtype=jnp.float32)
    # Deterministic synthetic weights (both Linear layers have bias=False).
    w1 = jax.random.normal(k1, (C, Cr), dtype=jnp.float32) * 0.1
    w2 = jax.random.normal(k2, (Cr, C), dtype=jnp.float32) * 0.1

    # Compute the reference before the kernel (the kernel may alias/donate its
    # input buffer via input_output_aliases).
    ref = se_layer_ref(x, w1, w2)

    out = se_layer(x, w1, w2)
    out = jax.block_until_ready(out)

    assert out.shape == (B, C, H, W)
    assert jnp.allclose(out, ref, atol=1e-5, rtol=1e-5)

    print("KERNEL_OK")
</pallas_src>

<mosaic_0001>
module attributes {stable_mosaic.version = 11 : i64} {
  func.func @_se_kernel(%arg0: i32, %arg1: memref<2x64x256xf32, #tpu.memory_space<vmem>>, %arg2: memref<64x4xf32, #tpu.memory_space<vmem>>, %arg3: memref<4x64xf32, #tpu.memory_space<vmem>>, %arg4: memref<2x64x256xf32, #tpu.memory_space<vmem>>) attributes {dimension_semantics = [#tpu.dimension_semantics<parallel>], iteration_bounds = array<i64: 2>, scalar_prefetch = 0 : i64, scratch_operands = 0 : i64, tpu.core_type = #tpu.core_type<tc>, window_params = [{transform_indices = @transform_0, window_bounds = array<i64: 2, 64, 256>}, {pipeline_mode = #tpu.pipeline_mode<synchronous>, transform_indices = @transform_1, window_bounds = array<i64: 64, 4>}, {pipeline_mode = #tpu.pipeline_mode<synchronous>, transform_indices = @transform_2, window_bounds = array<i64: 4, 64>}, {transform_indices = @transform_3, window_bounds = array<i64: 2, 64, 256>}]} {
    %c0 = arith.constant 0 : index
    %c0_0 = arith.constant 0 : index
    %c0_1 = arith.constant 0 : index
    %0 = vector.load %arg1[%c0, %c0_0, %c0_1] : memref<2x64x256xf32, #tpu.memory_space<vmem>>, vector<2x64x256xf32>
    %cst = arith.constant dense<0.000000e+00> : vector<2x64xf32>
    %1 = vector.multi_reduction <add>, %0, %cst [2] : vector<2x64x256xf32> to vector<2x64xf32>
    %cst_2 = arith.constant 2.560000e+02 : f32
    %2 = vector.broadcast %cst_2 : f32 to vector<2x64xf32>
    %3 = arith.divf %1, %2 : vector<2x64xf32>
    %c0_3 = arith.constant 0 : index
    %c0_4 = arith.constant 0 : index
    %4 = vector.load %arg2[%c0_3, %c0_4] : memref<64x4xf32, #tpu.memory_space<vmem>>, vector<64x4xf32>
    %cst_5 = arith.constant dense<0.000000e+00> : vector<2x4xf32>
    %5 = tpu.matmul %3, %4, %cst_5 {dimension_numbers = #tpu.dot_dimension_numbers<[1], [0], [0], [1], [0, 0, 1, 1], [], []>} : vector<2x64xf32>, vector<64x4xf32>, vector<2x4xf32> -> vector<2x4xf32>
    %cst_6 = arith.constant 0.000000e+00 : f32
    %6 = vector.broadcast %cst_6 : f32 to vector<2x4xf32>
    %7 = arith.maximumf %5, %6 : vector<2x4xf32>
    %c0_7 = arith.constant 0 : index
    %c0_8 = arith.constant 0 : index
    %8 = vector.load %arg3[%c0_7, %c0_8] : memref<4x64xf32, #tpu.memory_space<vmem>>, vector<4x64xf32>
    %cst_9 = arith.constant dense<0.000000e+00> : vector<2x64xf32>
    %9 = tpu.matmul %7, %8, %cst_9 {dimension_numbers = #tpu.dot_dimension_numbers<[1], [0], [0], [1], [0, 0, 1, 1], [], []>} : vector<2x4xf32>, vector<4x64xf32>, vector<2x64xf32> -> vector<2x64xf32>
    %10 = arith.negf %9 : vector<2x64xf32>
    %11 = math.exp %10 : vector<2x64xf32>
    %cst_10 = arith.constant 1.000000e+00 : f32
    %12 = vector.broadcast %cst_10 : f32 to vector<2x64xf32>
    %13 = arith.addf %12, %11 : vector<2x64xf32>
    %14 = arith.divf %12, %13 : vector<2x64xf32>
    %15 = vector.shape_cast %14 : vector<2x64xf32> to vector<2x64x1xf32>
    %16 = vector.broadcast %15 : vector<2x64x1xf32> to vector<2x64x256xf32>
    %17 = arith.mulf %0, %16 : vector<2x64x256xf32>
    %c0_11 = arith.constant 0 : index
    %c0_12 = arith.constant 0 : index
    %c0_13 = arith.constant 0 : index
    %18 = vector.load %arg4[%c0_11, %c0_12, %c0_13] : memref<2x64x256xf32, #tpu.memory_space<vmem>>, vector<2x64x256xf32>
    tpu.vector_store %arg4[%c0_11, %c0_12, %c0_13], %17 {strides = array<i32>} : memref<2x64x256xf32, #tpu.memory_space<vmem>>, vector<2x64x256xf32>,
    return
  }
  func.func @transform_0(%arg0: i32) -> (i32, i32, i32) {
    %c0_i32 = arith.constant 0 : i32
    %c0_i32_0 = arith.constant 0 : i32
    %c0_i32_1 = arith.constant 0 : i32
    return %arg0, %c0_i32, %c0_i32_0 : i32, i32, i32
  }
  func.func @transform_1(%arg0: i32) -> (i32, i32) {
    %c0_i32 = arith.constant 0 : i32
    %c0_i32_0 = arith.constant 0 : i32
    %c0_i32_1 = arith.constant 0 : i32
    return %c0_i32, %c0_i32_0 : i32, i32
  }
  func.func @transform_2(%arg0: i32) -> (i32, i32) {
    %c0_i32 = arith.constant 0 : i32
    %c0_i32_0 = arith.constant 0 : i32
    %c0_i32_1 = arith.constant 0 : i32
    return %c0_i32, %c0_i32_0 : i32, i32
  }
  func.func @transform_3(%arg0: i32) -> (i32, i32, i32) {
    %c0_i32 = arith.constant 0 : i32
    %c0_i32_0 = arith.constant 0 : i32
    %c0_i32_1 = arith.constant 0 : i32
    return %arg0, %c0_i32, %c0_i32_0 : i32, i32, i32
  }
}

</mosaic_0001>

<llo_original>
// kernel: tpu_custom_call.1
$region0: #{tpu_custom_call.1}
  #allocation0 [shape = 'u32[]', space=smem, size = 0x4, offset = 0x4, fixed_abs, tag = 'smem constant byte address 0x4 - core index']
  #allocation1 [shape = 'u32[72,128]{1,0:T(1,128)}', space=vmem, size = 0x9000, scoped, tag = 'internal scratch']
  %s0 = inlined_call_operand.hbm [shape: f32[4,64,256], index: 0, kind: input, shape index: {}, may-alias: {0,3}]
  %s1 = inlined_call_operand.vmem [shape: f32[64,4], index: 1, kind: input, shape index: {}]
  %s2 = inlined_call_operand.vmem [shape: f32[4,64], index: 2, kind: input, shape index: {}]
  %s3 = inlined_call_operand.hbm [shape: f32[4,64,256], index: 3, kind: output, shape index: {}, may-alias: {0,3}]
  %s4 = sld [smem:[#allocation0]]
  $region49: #{tpu_custom_call.1} parent=0
    _
  %s6 = ssub.s32 1, %s4
  %s7 = scalar_select 0, %s6, %s4
  $region1: #{tpu_custom_call.1} parent=0
    #allocation2 [shape = 'u8[262144]{0}', space=vmem, size = 0x40000, scoped, tag = 'input window, operand 0']
    #allocation3 [shape = 's32[2]{0}', space=sflag, size = 0x8, scoped, tag = 'scoped memory for tpu_custom_call.1']
    #allocation4 [shape = 's32[2]{0}', space=sflag, size = 0x8, scoped, tag = 'scoped memory for tpu_custom_call.1']
    #allocation5 [shape = 'u8[262144]{0}', space=vmem, size = 0x40000, scoped, tag = 'output window, operand 0']
    %8 = vsyncpa [#allocation3], 0
    %s9 = scalar_lea.sflag [#allocation3], 1
    %10 = vsyncpa %s9, 0
    %11 = vsyncpa [#allocation4], 0
    %s12 = scalar_lea.sflag [#allocation4], 1
    %13 = vsyncpa %s12, 0
    loop: start=0, step=1, limit=4
    $region2: #{tpu_custom_call.1} parent=1 // loop_pre_header
      _
    $region3: #{tpu_custom_call.1} parent=1 // loop_header
      %s15 = sphi 0, %s19
      %p16 = scmp.ge.s32.totalorder %s15, 4
      %s25 = sphi 0, %s27
      %s28 = sphi 0, %s25
      %s29 = sphi 0, %s28
      %s45 = sphi 0, %s29
      %s49 = sphi 0, %s49
      %s51 = sphi 0, %s49
      %s52 = sphi 0, %s51
      %s66 = sphi 0, %s52
      %s70 = sphi 0, %s70
      %s72 = sphi 0, %s70
      %s73 = sphi 0, %s72
      %s87 = sphi 0, %s73
      %s93 = sphi 0, %s95
      %s96 = sphi 0, %s93
      %s97 = sphi 0, %s96
      %s113 = sphi 0, %s97
    $region4: #{tpu_custom_call.1} parent=1 // loop_header_branch
      %18 = sbr.rel (%p16) target = $region8
    $region5: #{tpu_custom_call.1} parent=1 // loop_body
      %s20 = ssub.s32 %s15, 1
      %s21 = ssub.s32 %s15, 2
      %s22 = sadd.s32 %s15, 1
      %s23 = ssub.s32 %s15, %s22
      %p24 = scmp.eq.s32.totalorder %s23, 0
      %s26 = sadd.s32 %s25, 1
      %s27 = scalar_select %p24, %s25, %s26
      %p30 = pneg %p24
      %p31 = scmp.eq.s32.totalorder %s15, 1
      %p32 = por %p30, %p31
      %p33 = scmp.ne.s32.totalorder %s25, %s28
      %p34 = scmp.eq.s32.totalorder %s15, 0
      %p35 = por %p33, %p34
      %p36 = scmp.ne.s32.totalorder %s25, %s28
      %p37 = scmp.eq.s32.totalorder %s20, 1
      %p38 = por %p36, %p37
      %p39 = scmp.ne.s32.totalorder %s28, %s29
      %p40 = scmp.eq.s32.totalorder %s20, 0
      %p41 = por %p39, %p40
      %p42 = scmp.ne.s32.totalorder %s28, %s29
      %p43 = scmp.eq.s32.totalorder %s21, 1
      %p44 = por %p42, %p43
      %p46 = scmp.ne.s32.totalorder %s29, %s45
      %p47 = scmp.eq.s32.totalorder %s21, 0
      %p48 = por %p46, %p47
      %s50 = sadd.s32 %s49, 1
      %p53 = scmp.eq.s32.totalorder %s15, 1
      %p54 = scmp.ne.s32.totalorder %s49, %s51
      %p55 = scmp.eq.s32.totalorder %s15, 0
      %p56 = por %p54, %p55
      %p57 = scmp.ne.s32.totalorder %s49, %s51
      %p58 = scmp.eq.s32.totalorder %s20, 1
      %p59 = por %p57, %p58
      %p60 = scmp.ne.s32.totalorder %s51, %s52
      %p61 = scmp.eq.s32.totalorder %s20, 0
      %p62 = por %p60, %p61
      %p63 = scmp.ne.s32.totalorder %s51, %s52
      %p64 = scmp.eq.s32.totalorder %s21, 1
      %p65 = por %p63, %p64
      %p67 = scmp.ne.s32.totalorder %s52, %s66
      %p68 = scmp.eq.s32.totalorder %s21, 0
      %p69 = por %p67, %p68
      %s71 = sadd.s32 %s70, 1
      %p74 = scmp.eq.s32.totalorder %s15, 1
      %p75 = scmp.ne.s32.totalorder %s70, %s72
      %p76 = scmp.eq.s32.totalorder %s15, 0
      %p77 = por %p75, %p76
      %p78 = scmp.ne.s32.totalorder %s70, %s72
      %p79 = scmp.eq.s32.totalorder %s20, 1
      %p80 = por %p78, %p79
      %p81 = scmp.ne.s32.totalorder %s72, %s73
      %p82 = scmp.eq.s32.totalorder %s20, 0
      %p83 = por %p81, %p82
      %p84 = scmp.ne.s32.totalorder %s72, %s73
      %p85 = scmp.eq.s32.totalorder %s21, 1
      %p86 = por %p84, %p85
      %p88 = scmp.ne.s32.totalorder %s73, %s87
      %p89 = scmp.eq.s32.totalorder %s21, 0
      %p90 = por %p88, %p89
      %s91 = ssub.s32 %s15, %s22
      %p92 = scmp.eq.s32.totalorder %s91, 0
      %s94 = sadd.s32 %s93, 1
      %s95 = scalar_select %p92, %s93, %s94
      %p98 = pneg %p92
      %p99 = scmp.eq.s32.totalorder %s15, 1
      %p100 = por %p98, %p99
      %p101 = scmp.ne.s32.totalorder %s93, %s96
      %p102 = scmp.eq.s32.totalorder %s15, 0
      %p103 = por %p101, %p102
      %p104 = scmp.ne.s32.totalorder %s93, %s96
      %p105 = scmp.eq.s32.totalorder %s20, 1
      %p106 = por %p104, %p105
      %p107 = scmp.ne.s32.totalorder %s96, %s97
      %p108 = scmp.eq.s32.totalorder %s20, 0
      %p109 = por %p107, %p108
      %p110 = scmp.ne.s32.totalorder %s96, %s97
      %p111 = scmp.eq.s32.totalorder %s21, 1
      %p112 = por %p110, %p111
      %p114 = scmp.ne.s32.totalorder %s97, %s113
      %p115 = scmp.eq.s32.totalorder %s21, 0
      %p116 = por %p114, %p115
      %p117 = scmp.le.s32.totalorder 1, %s15
      %p118 = scmp.lt.s32.totalorder %s15, 3
      %p119 = pnand %p117, %p118
      %p120 = pneg %p119
      // Predicated region
      $region9: #{tpu_custom_call.1} parent=5 // pred_check
        _
      $region10: #{tpu_custom_call.1} parent=5 // pred_check_branch
        %122 = sbr.rel (%p119) target = $region12
      $region11: #{tpu_custom_call.1} parent=5 // pred_region
        %s123 = ssub.s32 %s15, 1
        // Predicated region
        $region13: #{tpu_custom_call.1} parent=11 // pred_check
          %p124 = pneg %p62
        $region14: #{tpu_custom_call.1} parent=11 // pred_check_branch
          %126 = sbr.rel (%p124) target = $region16
        $region15: #{tpu_custom_call.1} parent=11 // pred_region
          _
        $region16: #{tpu_custom_call.1} parent=11 // pred_fallthru
          _
        // Predicated region
        $region17: #{tpu_custom_call.1} parent=11 // pred_check
          %p127 = pneg %p83
        $region18: #{tpu_custom_call.1} parent=11 // pred_check_branch
          %129 = sbr.rel (%p127) target = $region20
        $region19: #{tpu_custom_call.1} parent=11 // pred_region
          _
        $region20: #{tpu_custom_call.1} parent=11 // pred_fallthru
          _
      $region12: #{tpu_custom_call.1} parent=5 // pred_fallthru
        _
      %p130 = scmp.lt.s32.totalorder %s15, 2
      // Predicated region
      $region21: #{tpu_custom_call.1} parent=5 // pred_check
        %p131 = pneg %p130
      $region22: #{tpu_custom_call.1} parent=5 // pred_check_branch
        %133 = sbr.rel (%p131) target = $region24
      $region23: #{tpu_custom_call.1} parent=5 // pred_region
        // Predicated region
        $region25: #{tpu_custom_call.1} parent=23 // pred_check
          %p134 = pneg %p35
        $region26: #{tpu_custom_call.1} parent=23 // pred_check_branch
          %136 = sbr.rel (%p134) target = $region28
        $region27: #{tpu_custom_call.1} parent=23 // pred_region
          %s137 = sand.u32 %s25, 1
          %s138 = scalar_lea.sflag [#allocation3], %s137
          %s139 = sand.u32 %s25, 1
          %s140 = smul.addr %s139, 256
          %s141 = scalar_lea.vmem [#allocation2], %s140
          %s142 = smul.u32 2, %s15
          %144 = vsyncadd %s138, 0
          %s145 = smul.addr %s142, 16
          %s146 = smul.addr %s145, 8
          %s147 = scalar_lea.hbm %s0, %s146
          %s148 = sshll.u32 %s147, 4
          %s149 = int_to_ptr.hbm [resolvable:$true] %s148
          %s150 = sshll.u32 %s141, 4
          %s151 = int_to_ptr.vmem [resolvable:$true] %s150
          %156 = dma.hbm_to_vmem [thread:$0]  %s149, 4096, %s151, %s138, 256, 256, 16
        $region28: #{tpu_custom_call.1} parent=23 // pred_fallthru
          _
      $region24: #{tpu_custom_call.1} parent=5 // pred_fallthru
        _
      %p157 = scmp.le.s32.totalorder 1, %s15
      %p158 = scmp.lt.s32.totalorder %s15, 3
      %p159 = pnand %p157, %p158
      %p160 = pneg %p159
      // Predicated region
      $region29: #{tpu_custom_call.1} parent=5 // pred_check
        _
      $region30: #{tpu_custom_call.1} parent=5 // pred_check_branch
        %162 = sbr.rel (%p159) target = $region32
      $region31: #{tpu_custom_call.1} parent=5 // pred_region
        %s163 = ssub.s32 %s15, 1
        %s164 = sand.u32 %s28, 1
        %s165 = scalar_lea.sflag [#allocation3], %s164
        %s166 = sand.u32 %s28, 1
        %s167 = smul.addr %s166, 256
        %s168 = scalar_lea.vmem [#allocation2], %s167
        // Predicated region
        $region33: #{tpu_custom_call.1} parent=31 // pred_check
          %p169 = pneg %p41
        $region34: #{tpu_custom_call.1} parent=31 // pred_check_branch
          %171 = sbr.rel (%p169) target = $region36
        $region35: #{tpu_custom_call.1} parent=31 // pred_region
          %173 = dma.done %s165, 4096
        $region36: #{tpu_custom_call.1} parent=31 // pred_fallthru
          _
        %s174 = sand.u32 %s28, 1
        %s175 = scalar_lea.sflag [#allocation3], %s174
        %s176 = sand.u32 %s28, 1
        %s177 = smul.addr %s176, 256
        %s178 = scalar_lea.vmem [#allocation2], %s177
        %p179 = pneg %p41
        %p180 = pneg %p38
        %p181 = pneg %p62
        %p182 = pneg %p59
        %p183 = pneg %p83
        %p184 = pneg %p80
        %p185 = pneg %p109
        %p186 = pneg %p106
        %s187 = sand.u32 %s96, 1
        %s188 = scalar_lea.sflag [#allocation4], %s187
        %s189 = sand.u32 %s96, 1
        %s190 = smul.addr %s189, 256
        %s191 = scalar_lea.vmem [#allocation5], %s190
        %s192 = smul.u32 2, %s20
        %s193 = smul.u32 2, %s20
        %v194 = vld [vmem:[%s168] sm:$0xff]
        %v195 = vld [vmem:[%s168 + $0x8] sm:$0xff]
        %v196 = vld [vmem:[%s168 + $0x10] sm:$0xff]
        %v197 = vld [vmem:[%s168 + $0x18] sm:$0xff]
        %v198 = vld [vmem:[%s168 + $0x20] sm:$0xff]
        %v199 = vld [vmem:[%s168 + $0x28] sm:$0xff]
        %v200 = vld [vmem:[%s168 + $0x30] sm:$0xff]
        %v201 = vld [vmem:[%s168 + $0x38] sm:$0xff]
        %v202 = vld [vmem:[%s168 + $0x40] sm:$0xff]
        %v203 = vld [vmem:[%s168 + $0x48] sm:$0xff]
        %v204 = vld [vmem:[%s168 + $0x50] sm:$0xff]
        %v205 = vld [vmem:[%s168 + $0x58] sm:$0xff]
        %v206 = vld [vmem:[%s168 + $0x60] sm:$0xff]
        %v207 = vld [vmem:[%s168 + $0x68] sm:$0xff]
        %v208 = vld [vmem:[%s168 + $0x70] sm:$0xff]
        %v209 = vld [vmem:[%s168 + $0x78] sm:$0xff]
        %v210 = vld [vmem:[%s168 + $0x80] sm:$0xff]
        %v211 = vld [vmem:[%s168 + $0x88] sm:$0xff]
        %v212 = vld [vmem:[%s168 + $0x90] sm:$0xff]
        %v213 = vld [vmem:[%s168 + $0x98] sm:$0xff]
        %v214 = vld [vmem:[%s168 + $0xa0] sm:$0xff]
        %v215 = vld [vmem:[%s168 + $0xa8] sm:$0xff]
        %v216 = vld [vmem:[%s168 + $0xb0] sm:$0xff]
        %v217 = vld [vmem:[%s168 + $0xb8] sm:$0xff]
        %v218 = vld [vmem:[%s168 + $0xc0] sm:$0xff]
        %v219 = vld [vmem:[%s168 + $0xc8] sm:$0xff]
        %v220 = vld [vmem:[%s168 + $0xd0] sm:$0xff]
        %v221 = vld [vmem:[%s168 + $0xd8] sm:$0xff]
        %v222 = vld [vmem:[%s168 + $0xe0] sm:$0xff]
        %v223 = vld [vmem:[%s168 + $0xe8] sm:$0xff]
        %v224 = vld [vmem:[%s168 + $0xf0] sm:$0xff]
        %v225 = vld [vmem:[%s168 + $0xf8] sm:$0xff]
        %v226 = vadd.f32 %v194, %v195
        %227 = vadd.xlane.f32.xlu0 %v226
        %v228 = vpop.xlane.xlu0 %227
        %v229 = vadd.f32 %v196, %v197
        %230 = vadd.xlane.f32.xlu0 %v229
        %v231 = vpop.xlane.xlu0 %230
        %v232 = vadd.f32 %v198, %v199
        %233 = vadd.xlane.f32.xlu0 %v232
        %v234 = vpop.xlane.xlu0 %233
        %v235 = vadd.f32 %v200, %v201
        %236 = vadd.xlane.f32.xlu0 %v235
        %v237 = vpop.xlane.xlu0 %236
        %v238 = vadd.f32 %v202, %v203
        %239 = vadd.xlane.f32.xlu0 %v238
        %v240 = vpop.xlane.xlu0 %239
        %v241 = vadd.f32 %v204, %v205
        %242 = vadd.xlane.f32.xlu0 %v241
        %v243 = vpop.xlane.xlu0 %242
        %v244 = vadd.f32 %v206, %v207
        %245 = vadd.xlane.f32.xlu0 %v244
        %v246 = vpop.xlane.xlu0 %245
        %v247 = vadd.f32 %v208, %v209
        %248 = vadd.xlane.f32.xlu0 %v247
        %v249 = vpop.xlane.xlu0 %248
        %v250 = vadd.f32 %v210, %v211
        %251 = vadd.xlane.f32.xlu0 %v250
        %v252 = vpop.xlane.xlu0 %251
        %v253 = vadd.f32 %v212, %v213
        %254 = vadd.xlane.f32.xlu0 %v253
        %v255 = vpop.xlane.xlu0 %254
        %v256 = vadd.f32 %v214, %v215
        %257 = vadd.xlane.f32.xlu0 %v256
        %v258 = vpop.xlane.xlu0 %257
        %v259 = vadd.f32 %v216, %v217
        %260 = vadd.xlane.f32.xlu0 %v259
        %v261 = vpop.xlane.xlu0 %260
        %v262 = vadd.f32 %v218, %v219
        %263 = vadd.xlane.f32.xlu0 %v262
        %v264 = vpop.xlane.xlu0 %263
        %v265 = vadd.f32 %v220, %v221
        %266 = vadd.xlane.f32.xlu0 %v265
        %v267 = vpop.xlane.xlu0 %266
        %v268 = vadd.f32 %v222, %v223
        %269 = vadd.xlane.f32.xlu0 %v268
        %v270 = vpop.xlane.xlu0 %269
        %v271 = vadd.f32 %v224, %v225
        %272 = vadd.xlane.f32.xlu0 %v271
        %v273 = vpop.xlane.xlu0 %272
        %v274 = vrcp.pop 256.0
        %v275 = vmul.f32 256.0, %v274
        %v276 = vsub.f32 1.0, %v275
        %v277 = vmul.f32 %v274, %v276
        %v278 = vadd.f32 %v274, %v277
        %vm279 = vweird.f32 %v274
        %v280 = vsel %vm279, %v274, %v278
        %v281 = vmul.f32 %v228, %v280
        %v282 = vmul.f32 %v231, %v280
        %v283 = vmul.f32 %v234, %v280
        %v284 = vmul.f32 %v237, %v280
        %v285 = vmul.f32 %v240, %v280
        %v286 = vmul.f32 %v243, %v280
        %v287 = vmul.f32 %v246, %v280
        %v288 = vmul.f32 %v249, %v280
        %v289 = vmul.f32 %v252, %v280
        %v290 = vmul.f32 %v255, %v280
        %v291 = vmul.f32 %v258, %v280
        %v292 = vmul.f32 %v261, %v280
        %v293 = vmul.f32 %v264, %v280
        %v294 = vmul.f32 %v267, %v280
        %v295 = vmul.f32 %v270, %v280
        %v296 = vmul.f32 %v273, %v280
        %v297 = vld [vmem:[%s1] sm:$0xff]
        %v298 = vld [vmem:[%s1 + $0x8] sm:$0xff]
        %v299 = vld [vmem:[%s1 + $0x10] sm:$0xff]
        %v300 = vld [vmem:[%s1 + $0x18] sm:$0xff]
        %v301 = vld [vmem:[%s1 + $0x20] sm:$0xff]
        %v302 = vld [vmem:[%s1 + $0x28] sm:$0xff]
        %v303 = vld [vmem:[%s1 + $0x30] sm:$0xff]
        %v304 = vld [vmem:[%s1 + $0x38] sm:$0xff]
        %v321 = vlaneseq
        %v322 = vand.u32 %v321, 127
        %v323 = vperm.slane %v281, %v322
        %v324 = vadd.s32 %v322, 4294967288
        %v325 = vperm.slane %v282, %v324
        %vm326 = vcmask 130112
        %v327 = vsel %vm326, %v325, %v323
        %v328 = vadd.s32 %v322, 4294967280
        %v329 = vperm.slane %v283, %v328
        %vm330 = vcmask 195712
        %v331 = vsel %vm330, %v329, %v327
        %v332 = vadd.s32 %v322, 4294967272
        %v333 = vperm.slane %v284, %v332
        %vm334 = vcmask 261312
        %v335 = vsel %vm334, %v333, %v331
        %v336 = vadd.s32 %v322, 4294967264
        %v337 = vperm.slane %v285, %v336
        %vm338 = vcmask 326912
        %v339 = vsel %vm338, %v337, %v335
        %v340 = vadd.s32 %v322, 4294967256
        %v341 = vperm.slane %v286, %v340
        %vm342 = vcmask 392512
        %v343 = vsel %vm342, %v341, %v339
        %v344 = vadd.s32 %v322, 4294967248
        %v345 = vperm.slane %v287, %v344
        %vm346 = vcmask 458112
        %v347 = vsel %vm346, %v345, %v343
        %v348 = vadd.s32 %v322, 4294967240
        %v349 = vperm.slane %v288, %v348
        %vm350 = vcmask 523712
        %v351 = vsel %vm350, %v349, %v347
        %v352 = vperm.slane %v289, %v322
        %v353 = vperm.slane %v290, %v324
        %v354 = vsel %vm326, %v353, %v352
        %v355 = vperm.slane %v291, %v328
        %v356 = vsel %vm330, %v355, %v354
        %v357 = vperm.slane %v292, %v332
        %v358 = vsel %vm334, %v357, %v356
        %v359 = vperm.slane %v293, %v336
        %v360 = vsel %vm338, %v359, %v358
        %v361 = vperm.slane %v294, %v340
        %v362 = vsel %vm342, %v361, %v360
        %v363 = vperm.slane %v295, %v344
        %v364 = vsel %vm346, %v363, %v362
        %v365 = vperm.slane %v296, %v348
        %v366 = vsel %vm350, %v365, %v364
        %vm367 = vcmask 1041409
        %v368 = vsel %vm367, %v366, %v351
        %vm369 = vcmask 523264
        %v370 = vsel %vm369, %v368, 0
        %372 = vmatpush.msra.mxu0 0.0
        %373 = vmatpush.msra.mxu0 0.0
        %374 = vmatpush.msra.mxu0 0.0
        %375 = vmatpush.msra.mxu0 0.0
        %376 = vmatpush.msra.mxu0 0.0
        %377 = vmatpush.msra.mxu0 0.0
        %378 = vmatpush.msra.mxu0 0.0
        %379 = vmatpush.msra.mxu0 0.0
        %380 = vmatpush.msra.mxu0 %v304
        %381 = vmatpush.msra.mxu0 %v303
        %382 = vmatpush.msra.mxu0 %v302
        %383 = vmatpush.msra.mxu0 %v301
        %384 = vmatpush.msra.mxu0 %v300
        %385 = vmatpush.msra.mxu0 %v299
        %386 = vmatpush.msra.mxu0 %v298
        %387 = vmatpush.msra.mxu0 %v297
        %388 = vmatmul.f32.gmra.mxu0 %v370
        %v389 = vpop.f32.mrf.mxu0
        %v390 = vadd.f32 0.0, %v389
        %391 = vdwg.mxu0
        %v392 = vmax.f32 %v390, 0.0
        %v393 = vld [vmem:[%s2] sm:$0xf]
        %vm394 = vcmask 31744
        %v396 = vsel %vm394, %v392, 0
        %vm398 = vcmask 1043456
        %v400 = vsel %vm398, %v393, 0
        %402 = vmatpush.msra.mxu0 0.0
        %403 = vmatpush.msra.mxu0 0.0
        %404 = vmatpush.msra.mxu0 0.0
        %405 = vmatpush.msra.mxu0 0.0
        %406 = vmatpush.msra.mxu0 0.0
        %407 = vmatpush.msra.mxu0 0.0
        %408 = vmatpush.msra.mxu0 0.0
        %409 = vmatpush.msra.mxu0 0.0
        %410 = vmatpush.msra.mxu0 0.0
        %411 = vmatpush.msra.mxu0 0.0
        %412 = vmatpush.msra.mxu0 0.0
        %413 = vmatpush.msra.mxu0 0.0
        %414 = vmatpush.msra.mxu0 0.0
        %415 = vmatpush.msra.mxu0 0.0
        %416 = vmatpush.msra.mxu0 0.0
        %417 = vmatpush.msra.mxu0 %v400
        %418 = vmatmul.f32.gmra.mxu0 %v396
        %v419 = vpop.f32.mrf.mxu0
        %v420 = vadd.f32 0.0, %v419
        %421 = vdwg.mxu0
        %v422 = vxor.u32 %v420, 2147483648
        %v423 = vmul.f32 %v422, 1.442695
        %v424 = vpow.pop %v423
        %v425 = vadd.f32 %v424, 1.0
        %v426 = vrcp.pop %v425
        %v427 = vmul.f32 %v425, %v426
        %v428 = vsub.f32 1.0, %v427
        %v429 = vmul.f32 %v426, %v428
        %v430 = vadd.f32 %v426, %v429
        %vm431 = vweird.f32 %v425
        %vm432 = vweird.f32 %v426
        %vm433 = vmor %vm431, %vm432
        %v434 = vsel %vm433, %v426, %v430
        %v435 = vand.u32 2147483647, %v425
        %vm436 = vcmp.eq.f32.partialorder %v435, 8.507059e+37
        %v437 = vand.u32 %v425, 2147483648
        %v438 = vor.u32 1.1754944e-38, %v437
        %v439 = vsel %vm436, %v438, %v434
        %v440 = vmul.f32 1.0, %v439
        %v441 = vperm.slane %v440, 0
        %v442 = vlaneseq
        %v443 = vshrl.u32 %v442, 7
        %445 = vset.pattern.permute.xlu0 %v443
        %446 = vperm.xlu0 %445, %v441
        %v447 = vpop.permute.xlu0 %446
        %v448 = vlaneseq
        %v449 = vshrl.u32 %v448, 7
        %v450 = vadd.s32 %v449, 8
        %451 = vset.pattern.permute.xlu0 %v450
        %452 = vperm.xlu0 %451, %v441
        %v453 = vpop.permute.xlu0 %452
        %v454 = vlaneseq
        %v455 = vshrl.u32 %v454, 7
        %v456 = vadd.s32 %v455, 16
        %457 = vset.pattern.permute.xlu0 %v456
        %458 = vperm.xlu0 %457, %v441
        %v459 = vpop.permute.xlu0 %458
        %v460 = vlaneseq
        %v461 = vshrl.u32 %v460, 7
        %v462 = vadd.s32 %v461, 24
        %463 = vset.pattern.permute.xlu0 %v462
        %464 = vperm.xlu0 %463, %v441
        %v465 = vpop.permute.xlu0 %464
        %v466 = vlaneseq
        %v467 = vshrl.u32 %v466, 7
        %v468 = vadd.s32 %v467, 32
        %469 = vset.pattern.permute.xlu0 %v468
        %470 = vperm.xlu0 %469, %v441
        %v471 = vpop.permute.xlu0 %470
        %v472 = vlaneseq
        %v473 = vshrl.u32 %v472, 7
        %v474 = vadd.s32 %v473, 40
        %475 = vset.pattern.permute.xlu0 %v474
        %476 = vperm.xlu0 %475, %v441
        %v477 = vpop.permute.xlu0 %476
        %v478 = vlaneseq
        %v479 = vshrl.u32 %v478, 7
        %v480 = vadd.s32 %v479, 48
        %481 = vset.pattern.permute.xlu0 %v480
        %482 = vperm.xlu0 %481, %v441
        %v483 = vpop.permute.xlu0 %482
        %v484 = vlaneseq
        %v485 = vshrl.u32 %v484, 7
        %v486 = vadd.s32 %v485, 56
        %487 = vset.pattern.permute.xlu0 %v486
        %488 = vperm.xlu0 %487, %v441
        %v489 = vpop.permute.xlu0 %488
        %v490 = vperm.slane %v440, 1
        %v491 = vlaneseq
        %v492 = vshrl.u32 %v491, 7
        %494 = vset.pattern.permute.xlu0 %v492
        %495 = vperm.xlu0 %494, %v490
        %v496 = vpop.permute.xlu0 %495
        %v497 = vlaneseq
        %v498 = vshrl.u32 %v497, 7
        %v499 = vadd.s32 %v498, 8
        %500 = vset.pattern.permute.xlu0 %v499
        %501 = vperm.xlu0 %500, %v490
        %v502 = vpop.permute.xlu0 %501
        %v503 = vlaneseq
        %v504 = vshrl.u32 %v503, 7
        %v505 = vadd.s32 %v504, 16
        %506 = vset.pattern.permute.xlu0 %v505
        %507 = vperm.xlu0 %506, %v490
        %v508 = vpop.permute.xlu0 %507
        %v509 = vlaneseq
        %v510 = vshrl.u32 %v509, 7
        %v511 = vadd.s32 %v510, 24
        %512 = vset.pattern.permute.xlu0 %v511
        %513 = vperm.xlu0 %512, %v490
        %v514 = vpop.permute.xlu0 %513
        %v515 = vlaneseq
        %v516 = vshrl.u32 %v515, 7
        %v517 = vadd.s32 %v516, 32
        %518 = vset.pattern.permute.xlu0 %v517
        %519 = vperm.xlu0 %518, %v490
        %v520 = vpop.permute.xlu0 %519
        %v521 = vlaneseq
        %v522 = vshrl.u32 %v521, 7
        %v523 = vadd.s32 %v522, 40
        %524 = vset.pattern.permute.xlu0 %v523
        %525 = vperm.xlu0 %524, %v490
        %v526 = vpop.permute.xlu0 %525
        %v527 = vlaneseq
        %v528 = vshrl.u32 %v527, 7
        %v529 = vadd.s32 %v528, 48
        %530 = vset.pattern.permute.xlu0 %v529
        %531 = vperm.xlu0 %530, %v490
        %v532 = vpop.permute.xlu0 %531
        %v533 = vlaneseq
        %v534 = vshrl.u32 %v533, 7
        %v535 = vadd.s32 %v534, 56
        %536 = vset.pattern.permute.xlu0 %v535
        %537 = vperm.xlu0 %536, %v490
        %v538 = vpop.permute.xlu0 %537
        %v539 = vmul.f32 %v194, %v447
        %v540 = vmul.f32 %v195, %v447
        %v541 = vmul.f32 %v196, %v453
        %v542 = vmul.f32 %v197, %v453
        %v543 = vmul.f32 %v198, %v459
        %v544 = vmul.f32 %v199, %v459
        %v545 = vmul.f32 %v200, %v465
        %v546 = vmul.f32 %v201, %v465
        %v547 = vmul.f32 %v202, %v471
        %v548 = vmul.f32 %v203, %v471
        %v549 = vmul.f32 %v204, %v477
        %v550 = vmul.f32 %v205, %v477
        %v551 = vmul.f32 %v206, %v483
        %v552 = vmul.f32 %v207, %v483
        %v553 = vmul.f32 %v208, %v489
        %v554 = vmul.f32 %v209, %v489
        %v555 = vmul.f32 %v210, %v496
        %v556 = vmul.f32 %v211, %v496
        %v557 = vmul.f32 %v212, %v502
        %v558 = vmul.f32 %v213, %v502
        %v559 = vmul.f32 %v214, %v508
        %v560 = vmul.f32 %v215, %v508
        %v561 = vmul.f32 %v216, %v514
        %v562 = vmul.f32 %v217, %v514
        %v563 = vmul.f32 %v218, %v520
        %v564 = vmul.f32 %v219, %v520
        %v565 = vmul.f32 %v220, %v526
        %v566 = vmul.f32 %v221, %v526
        %v567 = vmul.f32 %v222, %v532
        %v568 = vmul.f32 %v223, %v532
        %v569 = vmul.f32 %v224, %v538
        %v570 = vmul.f32 %v225, %v538
        %571 = vst [vmem:[%s191] sm:$0xff] %v539
        %572 = vst [vmem:[%s191 + $0x8] sm:$0xff] %v540
        %573 = vst [vmem:[%s191 + $0x10] sm:$0xff] %v541
        %574 = vst [vmem:[%s191 + $0x18] sm:$0xff] %v542
        %575 = vst [vmem:[%s191 + $0x20] sm:$0xff] %v543
        %576 = vst [vmem:[%s191 + $0x28] sm:$0xff] %v544
        %577 = vst [vmem:[%s191 + $0x30] sm:$0xff] %v545
        %578 = vst [vmem:[%s191 + $0x38] sm:$0xff] %v546
        %579 = vst [vmem:[%s191 + $0x40] sm:$0xff] %v547
        %580 = vst [vmem:[%s191 + $0x48] sm:$0xff] %v548
        %581 = vst [vmem:[%s191 + $0x50] sm:$0xff] %v549
        %582 = vst [vmem:[%s191 + $0x58] sm:$0xff] %v550
        %583 = vst [vmem:[%s191 + $0x60] sm:$0xff] %v551
        %584 = vst [vmem:[%s191 + $0x68] sm:$0xff] %v552
        %585 = vst [vmem:[%s191 + $0x70] sm:$0xff] %v553
        %586 = vst [vmem:[%s191 + $0x78] sm:$0xff] %v554
        %587 = vst [vmem:[%s191 + $0x80] sm:$0xff] %v555
        %588 = vst [vmem:[%s191 + $0x88] sm:$0xff] %v556
        %589 = vst [vmem:[%s191 + $0x90] sm:$0xff] %v557
        %590 = vst [vmem:[%s191 + $0x98] sm:$0xff] %v558
        %591 = vst [vmem:[%s191 + $0xa0] sm:$0xff] %v559
        %592 = vst [vmem:[%s191 + $0xa8] sm:$0xff] %v560
        %593 = vst [vmem:[%s191 + $0xb0] sm:$0xff] %v561
        %594 = vst [vmem:[%s191 + $0xb8] sm:$0xff] %v562
        %595 = vst [vmem:[%s191 + $0xc0] sm:$0xff] %v563
        %596 = vst [vmem:[%s191 + $0xc8] sm:$0xff] %v564
        %597 = vst [vmem:[%s191 + $0xd0] sm:$0xff] %v565
        %598 = vst [vmem:[%s191 + $0xd8] sm:$0xff] %v566
        %599 = vst [vmem:[%s191 + $0xe0] sm:$0xff] %v567
        %600 = vst [vmem:[%s191 + $0xe8] sm:$0xff] %v568
        %601 = vst [vmem:[%s191 + $0xf0] sm:$0xff] %v569
        %602 = vst [vmem:[%s191 + $0xf8] sm:$0xff] %v570
        %s603 = sand.u32 %s96, 1
        %s604 = scalar_lea.sflag [#allocation4], %s603
        %s605 = sand.u32 %s96, 1
        %s606 = smul.addr %s605, 256
        %s607 = scalar_lea.vmem [#allocation5], %s606
        // Predicated region
        $region37: #{tpu_custom_call.1} parent=31 // pred_check
          %p608 = pneg %p106
        $region38: #{tpu_custom_call.1} parent=31 // pred_check_branch
          %610 = sbr.rel (%p608) target = $region40
        $region39: #{tpu_custom_call.1} parent=31 // pred_region
          %s611 = smul.u32 2, %s20
          %613 = vsyncadd %s604, 0
          %s614 = smul.addr %s611, 16
          %s615 = smul.addr %s614, 8
          %s616 = scalar_lea.hbm %s3, %s615
          %s617 = sshll.u32 %s607, 4
          %s618 = int_to_ptr.vmem [resolvable:$true] %s617
          %s619 = sshll.u32 %s616, 4
          %s620 = int_to_ptr.hbm [resolvable:$true] %s619
          %625 = dma.vmem_to_hbm [thread:$0]  %s618, 4096, %s620, %s604, 256, 256, 16
        $region40: #{tpu_custom_call.1} parent=31 // pred_fallthru
          _
      $region32: #{tpu_custom_call.1} parent=5 // pred_fallthru
        _
      %p626 = scmp.le.s32.totalorder 2, %s15
      // Predicated region
      $region41: #{tpu_custom_call.1} parent=5 // pred_check
        %p627 = pneg %p626
      $region42: #{tpu_custom_call.1} parent=5 // pred_check_branch
        %629 = sbr.rel (%p627) target = $region44
      $region43: #{tpu_custom_call.1} parent=5 // pred_region
        %s630 = ssub.s32 %s15, 2
        // Predicated region
        $region45: #{tpu_custom_call.1} parent=43 // pred_check
          %p631 = pneg %p112
        $region46: #{tpu_custom_call.1} parent=43 // pred_check_branch
          %633 = sbr.rel (%p631) target = $region48
        $region47: #{tpu_custom_call.1} parent=43 // pred_region
          %s634 = sand.u32 %s97, 1
          %s635 = scalar_lea.sflag [#allocation4], %s634
          %s636 = sand.u32 %s97, 1
          %s637 = smul.addr %s636, 256
          %s638 = scalar_lea.vmem [#allocation5], %s637
          %640 = dma.done %s635, 4096
        $region48: #{tpu_custom_call.1} parent=43 // pred_fallthru
          _
      $region44: #{tpu_custom_call.1} parent=5 // pred_fallthru
        _
    $region6: #{tpu_custom_call.1} parent=1 // loop_footer
      %s19 = sadd.s32 1, %s15
    $region7: #{tpu_custom_call.1} parent=1 // loop_footer_branch
      %14 = sbr.rel target = $region3
    $region8: #{tpu_custom_call.1} parent=1 // loop_exit
      _
    %641 = vsyncpa [#allocation3], 1
    %s642 = scalar_lea.sflag [#allocation3], 1
    %643 = vsyncpa %s642, 1
    %644 = vsyncpa [#allocation4], 1
    %s645 = scalar_lea.sflag [#allocation4], 1
    %646 = vsyncpa %s645, 1

</llo_original>
